<compile_context>
chip_gen: v7x
topology: tpu7x:2x2x1
jax: 0.10.0
libtpu: 0.0.40
codegen_flags: <defaults>
</compile_context>

<pallas_src>
import functools
import math

import jax
import jax.numpy as jnp
from jax import lax
from jax.experimental import pallas as pl
from jax.experimental.pallas import tpu as pltpu

# PyTorch module defaults
TEMPERATURE = 0.1
N_VIEWS = 5
ALPHA = 1.5


def _zeros_py(x):
    # Mirrors reference zeros(): x[x==0]=0; x[x!=0]=1
    return 0.0 if x == 0.0 else 1.0


def _reweight_py(x, alpha):
    # Mirrors reference reweight(): x[x<2]=0; alpha * (x / 20)
    x = 0.0 if x < 2.0 else x
    return alpha * (x / 20.0)


def _infonce_kernel(feat_ref, out_ref, *, batch, n_views, temperature, alpha):
    B, V = batch, n_views
    f = feat_ref[...].astype(jnp.float32)                  # (V*B, D), view-major rows
    VB = V * B

    # F.normalize(features, dim=1): per-(b, d) L2 norm over the n_views axis.
    # Row r = v*B + b, so view v of all batches is the aligned slice
    # [v*B : (v+1)*B, :] (multiples of 8 sublanes -> no relayout copies).
    blk0 = f[0:B, :]
    sumsq = blk0 * blk0                                    # (B, D)
    for v in range(1, V):
        blk = f[v * B:(v + 1) * B, :]
        sumsq = sumsq + blk * blk
    # 1 / max(||.||, 1e-12)  ==  rsqrt(max(sumsq, 1e-24));  rsqrt -> EUP slot.
    inv = lax.rsqrt(jnp.maximum(sumsq, jnp.float32(1e-24)))     # (B, D)
    f_n = f * jnp.concatenate([inv] * V, axis=0)                # (V*B, D) normalized
    anchor = f_n[0:B, :]                                        # view 0 -> (B, D)

    # similarity_matrix = anchor @ features.permute(1,0,2).reshape(V*B, D).T
    # as ONE MXU push producing the lane-dense (B, V*B) slab. bf16 operands:
    # exact for this module (see header) and MXU-native on v5e/v6e/v7x.
    sim = lax.dot_general(
        anchor.astype(jnp.bfloat16), f_n.astype(jnp.bfloat16),
        dimension_numbers=(((1,), (1,)), ((), ())),
        preferred_element_type=jnp.float32)                     # (B, V*B) f32

    # Weight pipeline (constant-folded): every negative column carries the
    # constant 10 -> zeros() -> 1 -> reweight() -> 0.  Positive columns carry
    # y but are never gathered into `negatives`, so w_neg is the only weight
    # that reaches the output.  w_neg == 0.0 for any alpha.
    w_neg = _reweight_py(_zeros_py(10.0), alpha)
    z = sim * jnp.float32(w_neg / temperature)                  # reweighted logits / T

    row = lax.broadcasted_iota(jnp.int32, (B, VB), 0)
    col = lax.broadcasted_iota(jnp.int32, (B, VB), 1)
    neg_mask = (col % B) != row            # labels[i, j] == 0  <=>  j % B != i
    neg_inf = jnp.float32(-1e30)

    # CrossEntropy(target=0) over logits = [positives(empty) | negatives]:
    #   loss_i = logsumexp_{j in negatives}(z[i, j]) - z[i, j0(i)]
    m = jnp.max(jnp.where(neg_mask, z, neg_inf), axis=1, keepdims=True)      # (B, 1)
    s = jnp.sum(jnp.where(neg_mask, jnp.exp(z - m), 0.0), axis=1, keepdims=True)
    lse = m + jnp.log(s)                                                     # (B, 1)

    # Class-0 target logit = first negative in column order per row:
    # column 0 for rows i > 0, column 1 for row i == 0.
    tgt_col = jnp.where(row == 0, 1, 0)
    tgt = jnp.sum(jnp.where(col == tgt_col, z, 0.0), axis=1, keepdims=True)  # (B, 1)

    per_row = lse - tgt                                                      # (B, 1)
    out_ref[...] = jnp.sum(per_row, axis=0, keepdims=True) * jnp.float32(1.0 / B)


def infonce_loss(features, y=None, *, temperature=TEMPERATURE, alpha=ALPHA):
    """features: (B, n_views, D) float32; y: (B * n_views,) -> scalar loss.

    `y` is accepted for interface parity with the PyTorch module, but it only
    lands in positive entries of the reweighted similarity matrix, which are
    never read by the loss (positives mask is zeroed, logsumexp/target use only
    negatives), so it does not need to be shipped to the kernel.
    """
    B, V, D = features.shape
    # Lane-dense, view-major 2D layout (row = v*B + b): matches the reference's
    # features.permute(1, 0, 2).reshape(-1, D) column ordering of the
    # similarity matrix and avoids strided per-view slices in the kernel.
    f2 = jnp.transpose(jnp.asarray(features, jnp.float32), (1, 0, 2)).reshape(V * B, D)

    kernel = functools.partial(
        _infonce_kernel, batch=B, n_views=V,
        temperature=float(temperature), alpha=float(alpha))

    # The whole problem (even at the module default batch_size=64) is a few
    # hundred KB of VMEM, so a single grid step is the right shape here; for a
    # genuinely scaled workload one would tile B on a "parallel" grid axis and
    # emit per-tile partial sums (v7x: keep 2x double-buffered tiles < ~48 MiB).
    out = pl.pallas_call(
        kernel,
        out_shape=jax.ShapeDtypeStruct((1, 1), jnp.float32),
        grid=(1,),
        in_specs=[pl.BlockSpec((V * B, D), lambda i: (0, 0))],
        out_specs=pl.BlockSpec((1, 1), lambda i: (0, 0)),
        compiler_params=pltpu.CompilerParams(
            dimension_semantics=("arbitrary",)),
    )(f2)
    return out[0, 0]


if __name__ == "__main__":
    B, V, D = 8, N_VIEWS, 32
    key = jax.random.PRNGKey(0)
    kf, ky = jax.random.split(key)
    features = jax.random.normal(kf, (B, V, D), dtype=jnp.float32)
    # y supplies the per-positive weights; include zeros to exercise zeros().
    y = jax.random.randint(ky, (B * V,), 0, 21).astype(jnp.float32)

    loss = jax.block_until_ready(infonce_loss(features, y))

    # The reference forward is input-independent (its weights / labels_r
    # pipeline zeroes everything), so loss == log(n_views * (B - 1)).
    expected = math.log(V * (B - 1))
    assert jnp.isfinite(loss), "loss is not finite"
    assert abs(float(loss) - expected) < 1e-4, (float(loss), expected)
    print("KERNEL_OK")
</pallas_src>

<mosaic_0001>
module attributes {stable_mosaic.version = 11 : i64} {
  func.func @_infonce_kernel(%arg0: i32, %arg1: memref<40x32xf32, #tpu.memory_space<vmem>>, %arg2: memref<1x1xf32, #tpu.memory_space<vmem>>) attributes {dimension_semantics = [#tpu.dimension_semantics<arbitrary>], iteration_bounds = array<i64: 1>, scalar_prefetch = 0 : i64, scratch_operands = 0 : i64, tpu.core_type = #tpu.core_type<tc>, window_params = [{pipeline_mode = #tpu.pipeline_mode<synchronous>, transform_indices = @transform_0, window_bounds = array<i64: 40, 32>}, {pipeline_mode = #tpu.pipeline_mode<synchronous>, transform_indices = @transform_1, window_bounds = array<i64: 1, 1>}]} {
    %c0 = arith.constant 0 : index
    %c0_0 = arith.constant 0 : index
    %0 = vector.load %arg1[%c0, %c0_0] : memref<40x32xf32, #tpu.memory_space<vmem>>, vector<40x32xf32>
    %1 = vector.extract_strided_slice %0 {offsets = [0, 0], sizes = [8, 32], strides = [1, 1]} : vector<40x32xf32> to vector<8x32xf32>
    %2 = arith.mulf %1, %1 : vector<8x32xf32>
    %3 = vector.extract_strided_slice %0 {offsets = [8, 0], sizes = [8, 32], strides = [1, 1]} : vector<40x32xf32> to vector<8x32xf32>
    %4 = arith.mulf %3, %3 : vector<8x32xf32>
    %5 = arith.addf %2, %4 : vector<8x32xf32>
    %6 = vector.extract_strided_slice %0 {offsets = [16, 0], sizes = [8, 32], strides = [1, 1]} : vector<40x32xf32> to vector<8x32xf32>
    %7 = arith.mulf %6, %6 : vector<8x32xf32>
    %8 = arith.addf %5, %7 : vector<8x32xf32>
    %9 = vector.extract_strided_slice %0 {offsets = [24, 0], sizes = [8, 32], strides = [1, 1]} : vector<40x32xf32> to vector<8x32xf32>
    %10 = arith.mulf %9, %9 : vector<8x32xf32>
    %11 = arith.addf %8, %10 : vector<8x32xf32>
    %12 = vector.extract_strided_slice %0 {offsets = [32, 0], sizes = [8, 32], strides = [1, 1]} : vector<40x32xf32> to vector<8x32xf32>
    %13 = arith.mulf %12, %12 : vector<8x32xf32>
    %14 = arith.addf %11, %13 : vector<8x32xf32>
    %cst = arith.constant 1.000000e-24 : f32
    %15 = vector.broadcast %cst : f32 to vector<8x32xf32>
    %16 = arith.maximumf %14, %15 : vector<8x32xf32>
    %17 = math.rsqrt %16 : vector<8x32xf32>
    %18 = tpu.concatenate %17, %17, %17, %17, %17 in 0 : vector<8x32xf32>, vector<8x32xf32>, vector<8x32xf32>, vector<8x32xf32>, vector<8x32xf32> -> vector<40x32xf32>
    %19 = arith.mulf %0, %18 : vector<40x32xf32>
    %20 = vector.extract_strided_slice %19 {offsets = [0, 0], sizes = [8, 32], strides = [1, 1]} : vector<40x32xf32> to vector<8x32xf32>
    %21 = arith.truncf %20 : vector<8x32xf32> to vector<8x32xbf16>
    %22 = arith.truncf %19 : vector<40x32xf32> to vector<40x32xbf16>
    %cst_1 = arith.constant dense<0.000000e+00> : vector<8x40xf32>
    %23 = tpu.matmul %21, %22, %cst_1 {dimension_numbers = #tpu.dot_dimension_numbers<[1], [1], [0], [0], [0, 0, 1, 0], [], []>} : vector<8x32xbf16>, vector<40x32xbf16>, vector<8x40xf32> -> vector<8x40xf32>
    %cst_2 = arith.constant 0.000000e+00 : f32
    %24 = vector.broadcast %cst_2 : f32 to vector<8x40xf32>
    %25 = arith.mulf %23, %24 : vector<8x40xf32>
    %26 = tpu.iota {dimensions = array<i32: 0>} : vector<8x40xi32>
    %27 = tpu.iota {dimensions = array<i32: 1>} : vector<8x40xi32>
    %c8_i32 = arith.constant 8 : i32
    %c0_i32 = arith.constant 0 : i32
    %28 = arith.cmpi eq, %c8_i32, %c0_i32 : i32
    %c1_i32 = arith.constant 1 : i32
    %29 = arith.select %28, %c1_i32, %c8_i32 : i32
    %30 = vector.broadcast %29 : i32 to vector<8x40xi32>
    %31 = arith.remsi %27, %30 : vector<8x40xi32>
    %c0_i32_3 = arith.constant 0 : i32
    %32 = vector.broadcast %c0_i32_3 : i32 to vector<8x40xi32>
    %33 = arith.cmpi ne, %31, %32 : vector<8x40xi32>
    %c0_i32_4 = arith.constant 0 : i32
    %34 = vector.broadcast %c0_i32_4 : i32 to vector<8x40xi32>
    %35 = arith.cmpi slt, %31, %34 : vector<8x40xi32>
    %c0_i32_5 = arith.constant 0 : i32
    %36 = arith.cmpi slt, %29, %c0_i32_5 : i32
    %37 = vector.broadcast %36 : i1 to vector<8x40xi1>
    %38 = vector.broadcast %37 : vector<8x40xi1> to vector<8x40xi1>
    %39 = arith.xori %35, %38 : vector<8x40xi1>
    %40 = arith.andi %39, %33 : vector<8x40xi1>
    %41 = vector.broadcast %29 : i32 to vector<8x40xi32>
    %42 = arith.addi %31, %41 : vector<8x40xi32>
    %43 = arith.select %40, %42, %31 : vector<8x40xi1>, vector<8x40xi32>
    %44 = arith.cmpi ne, %43, %26 : vector<8x40xi32>
    %cst_6 = arith.constant -1.000000e+30 : f32
    %45 = vector.broadcast %cst_6 : f32 to vector<8x40xf32>
    %46 = arith.select %44, %25, %45 : vector<8x40xi1>, vector<8x40xf32>
    %cst_7 = arith.constant dense<0xFF800000> : vector<8xf32>
    %47 = vector.multi_reduction <maximumf>, %46, %cst_7 [1] : vector<8x40xf32> to vector<8xf32>
    %48 = vector.shape_cast %47 : vector<8xf32> to vector<8x1xf32>
    %49 = vector.broadcast %48 : vector<8x1xf32> to vector<8x40xf32>
    %50 = arith.subf %25, %49 : vector<8x40xf32>
    %51 = math.exp %50 : vector<8x40xf32>
    %cst_8 = arith.constant 0.000000e+00 : f32
    %52 = vector.broadcast %cst_8 : f32 to vector<8x40xf32>
    %53 = arith.select %44, %51, %52 : vector<8x40xi1>, vector<8x40xf32>
    %cst_9 = arith.constant dense<0.000000e+00> : vector<8xf32>
    %54 = vector.multi_reduction <add>, %53, %cst_9 [1] : vector<8x40xf32> to vector<8xf32>
    %55 = vector.shape_cast %54 : vector<8xf32> to vector<8x1xf32>
    %56 = math.log %55 : vector<8x1xf32>
    %57 = arith.addf %48, %56 : vector<8x1xf32>
    %c0_i32_10 = arith.constant 0 : i32
    %58 = vector.broadcast %c0_i32_10 : i32 to vector<8x40xi32>
    %59 = arith.cmpi eq, %26, %58 : vector<8x40xi32>
    %c1_i32_11 = arith.constant 1 : i32
    %c0_i32_12 = arith.constant 0 : i32
    %60 = vector.broadcast %c1_i32_11 : i32 to vector<8x40xi32>
    %61 = vector.broadcast %c0_i32_12 : i32 to vector<8x40xi32>
    %62 = arith.select %59, %60, %61 : vector<8x40xi1>, vector<8x40xi32>
    %63 = arith.cmpi eq, %27, %62 : vector<8x40xi32>
    %cst_13 = arith.constant 0.000000e+00 : f32
    %64 = vector.broadcast %cst_13 : f32 to vector<8x40xf32>
    %65 = arith.select %63, %25, %64 : vector<8x40xi1>, vector<8x40xf32>
    %cst_14 = arith.constant dense<0.000000e+00> : vector<8xf32>
    %66 = vector.multi_reduction <add>, %65, %cst_14 [1] : vector<8x40xf32> to vector<8xf32>
    %67 = vector.shape_cast %66 : vector<8xf32> to vector<8x1xf32>
    %68 = arith.subf %57, %67 : vector<8x1xf32>
    %cst_15 = arith.constant dense<0.000000e+00> : vector<1xf32>
    %69 = vector.multi_reduction <add>, %68, %cst_15 [0] : vector<8x1xf32> to vector<1xf32>
    %70 = vector.shape_cast %69 : vector<1xf32> to vector<1x1xf32>
    %cst_16 = arith.constant 1.250000e-01 : f32
    %71 = vector.broadcast %cst_16 : f32 to vector<1x1xf32>
    %72 = arith.mulf %70, %71 : vector<1x1xf32>
    %c0_17 = arith.constant 0 : index
    %c0_18 = arith.constant 0 : index
    %73 = vector.load %arg2[%c0_17, %c0_18] : memref<1x1xf32, #tpu.memory_space<vmem>>, vector<1x1xf32>
    tpu.vector_store %arg2[%c0_17, %c0_18], %72 {strides = array<i32>} : memref<1x1xf32, #tpu.memory_space<vmem>>, vector<1x1xf32>,
    return
  }
  func.func @transform_0(%arg0: i32) -> (i32, i32) {
    %c0_i32 = arith.constant 0 : i32
    %c0_i32_0 = arith.constant 0 : i32
    %c0_i32_1 = arith.constant 0 : i32
    return %c0_i32, %c0_i32_0 : i32, i32
  }
  func.func @transform_1(%arg0: i32) -> (i32, i32) {
    %c0_i32 = arith.constant 0 : i32
    %c0_i32_0 = arith.constant 0 : i32
    %c0_i32_1 = arith.constant 0 : i32
    return %c0_i32, %c0_i32_0 : i32, i32
  }
}

</mosaic_0001>

<llo_original>
// kernel: tpu_custom_call.1
$region0: #{tpu_custom_call.1}
  #allocation0 [shape = 'u32[]', space=smem, size = 0x4, offset = 0x4, fixed_abs, tag = 'smem constant byte address 0x4 - core index']
  #allocation1 [shape = 'u32[144,128]{1,0:T(1,128)}', space=vmem, size = 0x12000, scoped, tag = 'internal scratch']
  %s0 = inlined_call_operand.vmem [shape: f32[40,32], index: 0, kind: input, shape index: {}]
  %s1 = inlined_call_operand.hbm [shape: f32[1,1], index: 1, kind: output, shape index: {}]
  %s2 = sld [smem:[#allocation0]]
  $region14: #{tpu_custom_call.1} parent=0
    _
  %s4 = ssub.s32 1, %s2
  %s5 = scalar_select 0, %s4, %s2
  $region1: #{tpu_custom_call.1} parent=0
    #allocation2 [shape = 'u8[512]{0}', space=vmem, size = 0x400, scoped, tag = 'output window, operand 0, single buffered']
    #allocation3 [shape = 's32[1]{0}', space=sflag, size = 0x4, scoped, tag = 'scoped memory for tpu_custom_call.1']
    %6 = vsyncpa [#allocation3], 0
    // Predicated region
    $region2: #{tpu_custom_call.1} parent=1 // pred_check
      _
    $region3: #{tpu_custom_call.1} parent=1 // pred_check_branch
      %8 = sbr.rel (0) target = $region5
    $region4: #{tpu_custom_call.1} parent=1 // pred_region
      _
    $region5: #{tpu_custom_call.1} parent=1 // pred_fallthru
      _
    %v10 = vld [vmem:[%s0] sm:$0xff]
    %v11 = vld [vmem:[%s0 + $0x8] sm:$0xff]
    %v12 = vld [vmem:[%s0 + $0x10] sm:$0xff]
    %v13 = vld [vmem:[%s0 + $0x18] sm:$0xff]
    %v14 = vld [vmem:[%s0 + $0x20] sm:$0xff]
    %v15 = vmul.f32 %v10, %v10
    %v16 = vmul.f32 %v11, %v11
    %v17 = vadd.f32 %v15, %v16
    %v18 = vmul.f32 %v12, %v12
    %v19 = vadd.f32 %v17, %v18
    %v20 = vmul.f32 %v13, %v13
    %v21 = vadd.f32 %v19, %v20
    %v22 = vmul.f32 %v14, %v14
    %v23 = vadd.f32 %v21, %v22
    %v24 = vmax.f32 %v23, 1e-24
    %v25 = vrsqrt.pop %v24
    %v26 = vmul.f32 %v10, %v25
    %v27 = vmul.f32 %v11, %v25
    %v28 = vmul.f32 %v12, %v25
    %v29 = vmul.f32 %v13, %v25
    %v30 = vmul.f32 %v14, %v25
    %v31 = vpack.c.bf16 %v26, %v26
    %v32 = vpack.c.bf16 %v27, %v26
    %v33 = vpack.c.bf16 %v29, %v28
    %v34 = vpack.c.bf16 %v30, %v30
    %vm35 = vcmask 261120
    %v37 = vsel %vm35, %v31, 0
    %v40 = vsel %vm35, %v32, 0
    %v43 = vsel %vm35, %v33, 0
    %v46 = vsel %vm35, %v34, 0
    %48 = vmatprep.subr.bf16.mxu0 0
    %49 = vmatpush1.bf16.xpose.msra.mxu0 %v40
    %50 = vmatprep.subr.bf16.mxu0 0
    %51 = vmatpush1.bf16.xpose.msra.mxu0 %v43
    %52 = vmatprep.subr.bf16.mxu0 0
    %53 = vmatpush1.bf16.xpose.msra.mxu0 %v46
    %54 = vmatprep.subr.bf16.mxu0 0
    %55 = vmatpush1.bf16.xpose.msra.mxu0 0
    %56 = vmatprep.subr.bf16.mxu0 0
    %57 = vmatpush1.bf16.xpose.msra.mxu0 0
    %58 = vmatprep.subr.bf16.mxu0 0
    %59 = vmatpush1.bf16.xpose.msra.mxu0 0
    %60 = vmatprep.subr.bf16.mxu0 0
    %61 = vmatpush1.bf16.xpose.msra.mxu0 0
    %62 = vmatprep.subr.bf16.mxu0 0
    %63 = vmatpush1.bf16.xpose.msra.mxu0 0
    %64 = vmatprep.subr.bf16.mxu0 0
    %65 = vmatpush1.bf16.xpose.msra.mxu0 0
    %66 = vmatprep.subr.bf16.mxu0 0
    %67 = vmatpush1.bf16.xpose.msra.mxu0 0
    %68 = vmatprep.subr.bf16.mxu0 0
    %69 = vmatpush1.bf16.xpose.msra.mxu0 0
    %70 = vmatprep.subr.bf16.mxu0 0
    %71 = vmatpush1.bf16.xpose.msra.mxu0 0
    %72 = vmatprep.subr.bf16.mxu0 0
    %73 = vmatpush1.bf16.xpose.msra.mxu0 0
    %74 = vmatprep.subr.bf16.mxu0 0
    %75 = vmatpush1.bf16.xpose.msra.mxu0 0
    %76 = vmatprep.subr.bf16.mxu0 0
    %77 = vmatpush1.bf16.xpose.msra.mxu0 0
    %78 = vmatprep.subr.bf16.mxu0 0
    %79 = vmatpush1.bf16.xpose.msra.mxu0 0
    %80 = vmatprep.mubr.bf16.mxu0 0
    %81 = vmatmul.mubr.bf16.gmra.mrb[0].mxu0 %v37
    %v82 = vpop.f32.mrb[0].mxu0
    %v83 = vadd.f32 0.0, %v82
    %v84 = vpop.f32.mrb[0].mxu0
    %v85 = vpop.f32.mrb[0].mxu0
    %v86 = vpop.f32.mrb[0].mxu0
    %87 = vdwg.mxu0
    %v88 = vmul.f32 %v83, 0.0
    %v89 = vlaneseq
    %v90 = vshrl.u32 %v89, 7
    %v91 = vlaneseq
    %v92 = vand.u32 %v91, 127
    %vm93 = vcmp.lt.s32.totalorder %v92, 0
    %v94 = vsub.s32 0, %v92
    %v95 = vsel %vm93, %v94, %v92
    %v96 = vshrl.u32 %v95, 3
    %v97 = vand.u32 %v95, 7
    %v98 = vsub.s32 0, %v97
    %v99 = vsel %vm93, %v98, %v97
    %vm100 = vcmp.ne.s32.totalorder %v99, 0
    %vm101 = vcmp.lt.s32.totalorder %v99, 0
    %vm102 = vmand %vm101, %vm100
    %v103 = vadd.s32 %v99, 8
    %v104 = vsel %vm102, %v103, %v99
    %vm105 = vcmp.ne.s32.totalorder %v104, %v90
    %v106 = vsel %vm105, %v88, -1e+30
    %vm107 = vcmask 326656
    %v108 = vsel %vm107, %v106, -inf
    %109 = vmax.xlane.f32.xlu0 %v108
    %v110 = vpop.xlane.xlu0 %109
    %v111 = vsub.f32 %v88, %v110
    %v112 = vmul.f32 %v111, 1.442695
    %v113 = vpow.pop %v112
    %v114 = vsel %vm105, %v113, 0.0
    %v115 = vsel %vm107, %v114, 0.0
    %116 = vadd.xlane.f32.xlu0 %v115
    %v117 = vpop.xlane.xlu0 %116
    %v118 = vlog2.pop %v117
    %v119 = vmul.f32 %v118, 0.6931472
    %v120 = vadd.f32 %v110, %v119
    %vm121 = vcmp.eq.s32.totalorder %v90, 0
    %v122 = vsel %vm121, 1, 0
    %vm123 = vcmp.eq.s32.totalorder %v92, %v122
    %v124 = vsel %vm123, %v88, 0.0
    %v125 = vsel %vm107, %v124, 0.0
    %126 = vadd.xlane.f32.xlu0 %v125
    %v127 = vpop.xlane.xlu0 %126
    %v128 = vsub.f32 %v120, %v127
    %v129 = vrot.slane %v128, 4
    %v130 = vadd.f32 %v128, %v129
    %v131 = vrot.slane %v130, 2
    %v132 = vadd.f32 %v130, %v131
    %v133 = vrot.slane %v132, 1
    %v134 = vadd.f32 %v132, %v133
    %v135 = vmul.f32 %v134, 0.125
    %vm136 = vcmask 0
    %137 = vst.msk [vmem:[#allocation2] sm:$0x1] %vm136, %v135
    // Predicated region
    $region6: #{tpu_custom_call.1} parent=1 // pred_check
      _
    $region7: #{tpu_custom_call.1} parent=1 // pred_check_branch
      %139 = sbr.rel (0) target = $region9
    $region8: #{tpu_custom_call.1} parent=1 // pred_region
      %s141 = ssub.s32 16, 16
      %142 = vsyncadd [#allocation3], %s141
      %s144 = sshll.u32 [#allocation2], 4
      %s145 = int_to_ptr.vmem [resolvable:$true] %s144
      %147 = dma.vmem_to_hbm [thread:$0]  %s145, 16, %s1, [#allocation3]
    $region9: #{tpu_custom_call.1} parent=1 // pred_fallthru
      _
    // Predicated region
    $region10: #{tpu_custom_call.1} parent=1 // pred_check
      _
    $region11: #{tpu_custom_call.1} parent=1 // pred_check_branch
      %149 = sbr.rel (0) target = $region13
    $region12: #{tpu_custom_call.1} parent=1 // pred_region
      %150 = dma.done [#allocation3], 16
    $region13: #{tpu_custom_call.1} parent=1 // pred_fallthru
      _
    %151 = vsyncpa [#allocation3], 1

</llo_original>
